<compile_context>
chip_gen: v7x
topology: tpu7x:2x2x1
jax: 0.10.0
libtpu: 0.0.40
codegen_flags: <defaults>
</compile_context>

<pallas_src>
import functools

import jax
import jax.numpy as jnp
from jax.experimental import pallas as pl
from jax.experimental.pallas import tpu as pltpu


def _round_up(x, m):
    return (x + m - 1) // m * m


def _vmem_capacity_bytes():
    try:
        info = pltpu.get_tpu_info()
        cap = getattr(info, "vmem_capacity_bytes", None)
        if cap:
            return int(cap)
    except Exception:
        pass
    return 64 << 20  # conservative fallback (v7x per-TC VMEM)


# ----------------------------- kernels --------------------------------------


def ffn_resident_kernel(x_ref, w1_ref, b1_ref, w2_ref, b2_ref, o_ref):
    # Full W1/W2/biases resident in VMEM; single pass per token tile.
    xb = x_ref[...].astype(w1_ref.dtype)
    h = jnp.dot(xb, w1_ref[...], preferred_element_type=jnp.float32)
    h = jnp.maximum(h + b1_ref[...], 0.0)
    out = jnp.dot(h.astype(w2_ref.dtype), w2_ref[...],
                  preferred_element_type=jnp.float32)
    o_ref[...] = (out + b2_ref[...]).astype(o_ref.dtype)


def _blocked_step(x_ref, w1_ref, b1_ref, w2_ref, acc_ref):
    # One tile_ff block of the d_ff reduction (j = last, "arbitrary" grid axis).
    j = pl.program_id(1)

    @pl.when(j == 0)
    def _():
        acc_ref[...] = jnp.zeros_like(acc_ref)

    xb = x_ref[...].astype(w1_ref.dtype)
    h = jnp.dot(xb, w1_ref[...], preferred_element_type=jnp.float32)
    h = jnp.maximum(h + b1_ref[...], 0.0)
    acc_ref[...] += jnp.dot(h.astype(w2_ref.dtype), w2_ref[...],
                            preferred_element_type=jnp.float32)


def ffn_blocked_kernel_f32out(x_ref, w1_ref, b1_ref, w2_ref, b2_ref, o_ref):
    # f32 output: accumulate directly into the resident output block
    # (saves the tile_m x d_model_p f32 scratch -> VMEM headroom on v7x).
    _blocked_step(x_ref, w1_ref, b1_ref, w2_ref, o_ref)

    @pl.when(pl.program_id(1) == pl.num_programs(1) - 1)
    def _():
        o_ref[...] += b2_ref[...].astype(jnp.float32)


def ffn_blocked_kernel_acc(x_ref, w1_ref, b1_ref, w2_ref, b2_ref, o_ref, acc_ref):
    # Non-f32 output: accumulate in f32 scratch, cast once on the last j step.
    _blocked_step(x_ref, w1_ref, b1_ref, w2_ref, acc_ref)

    @pl.when(pl.program_id(1) == pl.num_programs(1) - 1)
    def _():
        o_ref[...] = (acc_ref[...] + b2_ref[...]).astype(o_ref.dtype)


# ----------------------------- wrapper ---------------------------------------


@functools.partial(
    jax.jit, static_argnames=("tile_m", "tile_ff", "training", "weights_resident"))
def pointwise_ffn(x, w1, b1, w2, b2, *, tile_m=512, tile_ff=1024,
                  training=False, weights_resident=None):
    """x: (B, S, d_model); w1: (d_model, d_ff); w2: (d_ff, d_model)."""
    # TODO(synk): training-mode dropout not implemented (eval mode only).
    assert not training, "training-mode dropout not implemented"

    B, S, d_model = x.shape
    d_ff = w1.shape[1]
    M = B * S

    x_it = x.dtype.itemsize
    w_it = w1.dtype.itemsize
    out_dtype = x.dtype

    d_model_p = _round_up(d_model, 128)
    d_ff_128 = _round_up(d_ff, 128)

    vmem_cap = _vmem_capacity_bytes()
    usable = vmem_cap - (16 << 20)  # headroom for Mosaic internal scratch etc.

    # ---- token tile -------------------------------------------------------
    M8 = _round_up(M, 8)
    tile_m = min(_round_up(tile_m, 8), M8)
    # Keep >= 2 token tiles when there is enough work so multi-TC chips (v7x)
    # can shard the "parallel" axis across TensorCores.
    if M8 <= tile_m and M8 >= 512:
        tile_m = _round_up((M8 + 1) // 2, 8)

    # ---- path selection ----------------------------------------------------
    weight_bytes = (2 * d_model_p * d_ff_128 + d_ff_128 + d_model_p) * w_it

    def fast_bytes(tm):
        return (2 * weight_bytes                     # resident W1/W2/biases (x2 buffering)
                + 4 * tm * d_model_p * x_it          # x + out tiles, double-buffered
                + tm * d_ff_128 * 4                  # f32 hidden activations
                + tm * d_model_p * 4)                # f32 second-matmul result

    if weights_resident is None:
        weights_resident = fast_bytes(tile_m) <= usable

    if weights_resident:
        # ---------------- weights-resident fast path ------------------------
        d_ff_p = d_ff_128
        M_p = _round_up(M, tile_m)
        grid = (M_p // tile_m,)
        in_specs = [
            pl.BlockSpec((tile_m, d_model_p), lambda i: (i, 0)),      # x tile
            pl.BlockSpec((d_model_p, d_ff_p), lambda i: (0, 0)),      # W1 (resident)
            pl.BlockSpec((1, d_ff_p), lambda i: (0, 0)),              # b1
            pl.BlockSpec((d_ff_p, d_model_p), lambda i: (0, 0)),      # W2 (resident)
            pl.BlockSpec((1, d_model_p), lambda i: (0, 0)),           # b2
        ]
        out_specs = pl.BlockSpec((tile_m, d_model_p), lambda i: (i, 0))
        scratch_shapes = []
        kernel = ffn_resident_kernel
        dim_sem = ("parallel",)
        vmem_need = fast_bytes(tile_m)
        hbm_bytes = 2 * M_p * d_model_p * x_it + weight_bytes  # weights read once
    else:
        # ---------------- blocked d_ff reduction path -----------------------
        tile_ff = min(_round_up(tile_ff, 128), d_ff_128)

        def blocked_bytes(tm, tf):
            return (4 * tm * d_model_p * x_it                  # x + out tiles
                    + 2 * (d_model_p * tf + tf) * w_it         # W1 + b1 blocks
                    + 2 * (tf * d_model_p + d_model_p) * w_it  # W2 + b2 blocks
                    + tm * d_model_p * 4                       # f32 accumulator/output
                    + tm * tf * 4)                             # f32 hidden activations

        # Shrink tiles until the working set fits the per-generation budget.
        while blocked_bytes(tile_m, tile_ff) > usable and tile_ff > 128:
            tile_ff = max(128, _round_up(tile_ff // 2, 128))
        while blocked_bytes(tile_m, tile_ff) > usable and tile_m > 8:
            tile_m = max(8, _round_up(tile_m // 2, 8))

        d_ff_p = _round_up(d_ff, tile_ff)
        M_p = _round_up(M, tile_m)
        grid = (M_p // tile_m, d_ff_p // tile_ff)
        in_specs = [
            pl.BlockSpec((tile_m, d_model_p), lambda i, j: (i, 0)),   # x tile
            pl.BlockSpec((d_model_p, tile_ff), lambda i, j: (0, j)),  # W1 block
            pl.BlockSpec((1, tile_ff), lambda i, j: (0, j)),          # b1 block
            pl.BlockSpec((tile_ff, d_model_p), lambda i, j: (j, 0)),  # W2 block
            pl.BlockSpec((1, d_model_p), lambda i, j: (0, 0)),        # b2
        ]
        out_specs = pl.BlockSpec((tile_m, d_model_p), lambda i, j: (i, 0))
        if out_dtype == jnp.float32:
            kernel = ffn_blocked_kernel_f32out
            scratch_shapes = []
        else:
            kernel = ffn_blocked_kernel_acc
            scratch_shapes = [pltpu.VMEM((tile_m, d_model_p), jnp.float32)]
        dim_sem = ("parallel", "arbitrary")
        vmem_need = blocked_bytes(tile_m, tile_ff)
        # Weights are re-streamed once per token tile on this path.
        n_i = M_p // tile_m
        hbm_bytes = (2 * M_p * d_model_p * x_it
                     + n_i * (2 * d_model_p * d_ff_p + d_ff_p + d_model_p) * w_it)

    vmem_limit = int(min(max(vmem_need + (8 << 20), 32 << 20),
                         vmem_cap - (8 << 20)))

    # ---- padding (skipped when already aligned; shapes are static) ---------
    x2 = x.reshape(M, d_model)
    if M_p != M or d_model_p != d_model:
        x2 = jnp.pad(x2, ((0, M_p - M), (0, d_model_p - d_model)))
    w1p = w1
    if d_model_p != d_model or d_ff_p != d_ff:
        w1p = jnp.pad(w1, ((0, d_model_p - d_model), (0, d_ff_p - d_ff)))
    b1p = b1.reshape(1, d_ff)
    if d_ff_p != d_ff:
        b1p = jnp.pad(b1p, ((0, 0), (0, d_ff_p - d_ff)))
    w2p = w2
    if d_ff_p != d_ff or d_model_p != d_model:
        w2p = jnp.pad(w2, ((0, d_ff_p - d_ff), (0, d_model_p - d_model)))
    b2p = b2.reshape(1, d_model)
    if d_model_p != d_model:
        b2p = jnp.pad(b2p, ((0, 0), (0, d_model_p - d_model)))

    cost = pl.CostEstimate(
        flops=int(4 * M_p * d_model_p * d_ff_p),
        transcendentals=0,
        bytes_accessed=int(hbm_bytes),
    )

    out = pl.pallas_call(
        kernel,
        out_shape=jax.ShapeDtypeStruct((M_p, d_model_p), out_dtype),
        grid_spec=pltpu.PrefetchScalarGridSpec(
            num_scalar_prefetch=0,
            grid=grid,
            in_specs=in_specs,
            out_specs=out_specs,
            scratch_shapes=scratch_shapes,
        ),
        compiler_params=pltpu.CompilerParams(
            dimension_semantics=dim_sem,
            vmem_limit_bytes=vmem_limit,
        ),
        cost_estimate=cost,
    )(x2, w1p, b1p, w2p, b2p)

    if M_p != M or d_model_p != d_model:
        out = out[:M, :d_model]
    return out.reshape(B, S, d_model)


def init_params(key, d_model, d_ff, dtype=jnp.float32):
    """Deterministic init mimicking nn.Linear's U(-1/sqrt(in), 1/sqrt(in))."""
    k1, k2, k3, k4 = jax.random.split(key, 4)
    lim1 = 1.0 / (d_model ** 0.5)
    lim2 = 1.0 / (d_ff ** 0.5)
    # Stored already transposed: (in_features, out_features)
    w1 = jax.random.uniform(k1, (d_model, d_ff), jnp.float32, -lim1, lim1).astype(dtype)
    b1 = jax.random.uniform(k2, (d_ff,), jnp.float32, -lim1, lim1).astype(dtype)
    w2 = jax.random.uniform(k3, (d_ff, d_model), jnp.float32, -lim2, lim2).astype(dtype)
    b2 = jax.random.uniform(k4, (d_model,), jnp.float32, -lim2, lim2).astype(dtype)
    return w1, b1, w2, b2


if __name__ == "__main__":
    key = jax.random.PRNGKey(0)

    # Test 1: toy shapes from the spec (padding + weights-resident fast path).
    batch, seq, d_model, d_ff = 2, 8, 32, 64
    kx, kp, key = jax.random.split(key, 3)
    x = jax.random.normal(kx, (batch, seq, d_model), jnp.float32)
    w1, b1, w2, b2 = init_params(kp, d_model, d_ff)
    out = pointwise_ffn(x, w1, b1, w2, b2)
    jax.block_until_ready(out)
    ref = jnp.maximum(x @ w1 + b1, 0.0) @ w2 + b2
    assert out.shape == (batch, seq, d_model)
    assert jnp.allclose(out, ref, atol=1e-5, rtol=1e-5)

    # Test 2: lane-aligned dims, forced blocked-reduction path with multiple
    # d_ff tiles (f32 direct-output accumulation, no scratch).
    batch, seq, d_model, d_ff = 2, 8, 128, 256
    kx, kp, key = jax.random.split(key, 3)
    x = jax.random.normal(kx, (batch, seq, d_model), jnp.float32)
    w1, b1, w2, b2 = init_params(kp, d_model, d_ff)
    out = pointwise_ffn(x, w1, b1, w2, b2, tile_ff=128, weights_resident=False)
    jax.block_until_ready(out)
    ref = jnp.maximum(x @ w1 + b1, 0.0) @ w2 + b2
    assert out.shape == (batch, seq, d_model)
    assert jnp.allclose(out, ref, atol=1e-4, rtol=1e-4)

    # Test 3: bf16 activations/weights, blocked path with f32 scratch
    # accumulator, multiple token tiles and multiple d_ff tiles.
    batch, seq, d_model, d_ff = 2, 64, 128, 384
    kx, kp, key = jax.random.split(key, 3)
    x = jax.random.normal(kx, (batch, seq, d_model), jnp.float32).astype(jnp.bfloat16)
    w1, b1, w2, b2 = init_params(kp, d_model, d_ff, dtype=jnp.bfloat16)
    out = pointwise_ffn(x, w1, b1, w2, b2, tile_m=64, tile_ff=128,
                        weights_resident=False)
    jax.block_until_ready(out)
    xf, w1f, b1f, w2f, b2f = (a.astype(jnp.float32) for a in (x, w1, b1, w2, b2))
    ref = jnp.maximum(xf @ w1f + b1f, 0.0) @ w2f + b2f
    assert out.shape == (batch, seq, d_model)
    assert jnp.allclose(out.astype(jnp.float32), ref, atol=5e-2, rtol=5e-2)

    print("KERNEL_OK")
</pallas_src>

<mosaic_0001>
module attributes {stable_mosaic.version = 11 : i64} {
  func.func @ffn_resident_kernel(%arg0: i32, %arg1: memref<16x128xf32, #tpu.memory_space<vmem>>, %arg2: memref<128x128xf32, #tpu.memory_space<vmem>>, %arg3: memref<1x128xf32, #tpu.memory_space<vmem>>, %arg4: memref<128x128xf32, #tpu.memory_space<vmem>>, %arg5: memref<1x128xf32, #tpu.memory_space<vmem>>, %arg6: memref<16x128xf32, #tpu.memory_space<vmem>>) attributes {dimension_semantics = [#tpu.dimension_semantics<parallel>], iteration_bounds = array<i64: 1>, scalar_prefetch = 0 : i64, scratch_operands = 0 : i64, tpu.core_type = #tpu.core_type<tc>, window_params = [{transform_indices = @transform_0, window_bounds = array<i64: 16, 128>}, {pipeline_mode = #tpu.pipeline_mode<synchronous>, transform_indices = @transform_1, window_bounds = array<i64: 128, 128>}, {pipeline_mode = #tpu.pipeline_mode<synchronous>, transform_indices = @transform_2, window_bounds = array<i64: 1, 128>}, {pipeline_mode = #tpu.pipeline_mode<synchronous>, transform_indices = @transform_3, window_bounds = array<i64: 128, 128>}, {pipeline_mode = #tpu.pipeline_mode<synchronous>, transform_indices = @transform_4, window_bounds = array<i64: 1, 128>}, {transform_indices = @transform_5, window_bounds = array<i64: 16, 128>}]} {
    %c0 = arith.constant 0 : index
    %c0_0 = arith.constant 0 : index
    %0 = vector.load %arg1[%c0, %c0_0] : memref<16x128xf32, #tpu.memory_space<vmem>>, vector<16x128xf32>
    %c0_1 = arith.constant 0 : index
    %c0_2 = arith.constant 0 : index
    %1 = vector.load %arg2[%c0_1, %c0_2] : memref<128x128xf32, #tpu.memory_space<vmem>>, vector<128x128xf32>
    %cst = arith.constant dense<0.000000e+00> : vector<16x128xf32>
    %2 = tpu.matmul %0, %1, %cst {dimension_numbers = #tpu.dot_dimension_numbers<[1], [0], [0], [1], [0, 0, 1, 1], [], []>} : vector<16x128xf32>, vector<128x128xf32>, vector<16x128xf32> -> vector<16x128xf32>
    %c0_3 = arith.constant 0 : index
    %c0_4 = arith.constant 0 : index
    %3 = vector.load %arg3[%c0_3, %c0_4] : memref<1x128xf32, #tpu.memory_space<vmem>>, vector<1x128xf32>
    %4 = vector.broadcast %3 : vector<1x128xf32> to vector<16x128xf32>
    %5 = arith.addf %2, %4 : vector<16x128xf32>
    %cst_5 = arith.constant 0.000000e+00 : f32
    %6 = vector.broadcast %cst_5 : f32 to vector<16x128xf32>
    %7 = arith.maximumf %5, %6 : vector<16x128xf32>
    %c0_6 = arith.constant 0 : index
    %c0_7 = arith.constant 0 : index
    %8 = vector.load %arg4[%c0_6, %c0_7] : memref<128x128xf32, #tpu.memory_space<vmem>>, vector<128x128xf32>
    %cst_8 = arith.constant dense<0.000000e+00> : vector<16x128xf32>
    %9 = tpu.matmul %7, %8, %cst_8 {dimension_numbers = #tpu.dot_dimension_numbers<[1], [0], [0], [1], [0, 0, 1, 1], [], []>} : vector<16x128xf32>, vector<128x128xf32>, vector<16x128xf32> -> vector<16x128xf32>
    %c0_9 = arith.constant 0 : index
    %c0_10 = arith.constant 0 : index
    %10 = vector.load %arg5[%c0_9, %c0_10] : memref<1x128xf32, #tpu.memory_space<vmem>>, vector<1x128xf32>
    %11 = vector.broadcast %10 : vector<1x128xf32> to vector<16x128xf32>
    %12 = arith.addf %9, %11 : vector<16x128xf32>
    %c0_11 = arith.constant 0 : index
    %c0_12 = arith.constant 0 : index
    %13 = vector.load %arg6[%c0_11, %c0_12] : memref<16x128xf32, #tpu.memory_space<vmem>>, vector<16x128xf32>
    tpu.vector_store %arg6[%c0_11, %c0_12], %12 {strides = array<i32>} : memref<16x128xf32, #tpu.memory_space<vmem>>, vector<16x128xf32>,
    return
  }
  func.func @transform_0(%arg0: i32) -> (i32, i32) {
    %c0_i32 = arith.constant 0 : i32
    %c0_i32_0 = arith.constant 0 : i32
    return %arg0, %c0_i32 : i32, i32
  }
  func.func @transform_1(%arg0: i32) -> (i32, i32) {
    %c0_i32 = arith.constant 0 : i32
    %c0_i32_0 = arith.constant 0 : i32
    %c0_i32_1 = arith.constant 0 : i32
    return %c0_i32, %c0_i32_0 : i32, i32
  }
  func.func @transform_2(%arg0: i32) -> (i32, i32) {
    %c0_i32 = arith.constant 0 : i32
    %c0_i32_0 = arith.constant 0 : i32
    %c0_i32_1 = arith.constant 0 : i32
    return %c0_i32, %c0_i32_0 : i32, i32
  }
  func.func @transform_3(%arg0: i32) -> (i32, i32) {
    %c0_i32 = arith.constant 0 : i32
    %c0_i32_0 = arith.constant 0 : i32
    %c0_i32_1 = arith.constant 0 : i32
    return %c0_i32, %c0_i32_0 : i32, i32
  }
  func.func @transform_4(%arg0: i32) -> (i32, i32) {
    %c0_i32 = arith.constant 0 : i32
    %c0_i32_0 = arith.constant 0 : i32
    %c0_i32_1 = arith.constant 0 : i32
    return %c0_i32, %c0_i32_0 : i32, i32
  }
  func.func @transform_5(%arg0: i32) -> (i32, i32) {
    %c0_i32 = arith.constant 0 : i32
    %c0_i32_0 = arith.constant 0 : i32
    return %arg0, %c0_i32 : i32, i32
  }
}

</mosaic_0001>

<llo_original>
// kernel: pointwise_ffn.1
$region0: #{pointwise_ffn.1}
  #allocation0 [shape = 'u32[]', space=smem, size = 0x4, offset = 0x4, fixed_abs, tag = 'smem constant byte address 0x4 - core index']
  #allocation1 [shape = 'u32[144,128]{1,0:T(1,128)}', space=vmem, size = 0x12000, scoped, tag = 'internal scratch']
  %s0 = inlined_call_operand.vmem [shape: f32[16,128], index: 0, kind: input, shape index: {}]
  %s1 = inlined_call_operand.vmem [shape: f32[128,128], index: 1, kind: input, shape index: {}]
  %s2 = inlined_call_operand.vmem [shape: f32[1,128], index: 2, kind: input, shape index: {}]
  %s3 = inlined_call_operand.vmem [shape: f32[128,128], index: 3, kind: input, shape index: {}]
  %s4 = inlined_call_operand.vmem [shape: f32[1,128], index: 4, kind: input, shape index: {}]
  %s5 = inlined_call_operand.vmem [shape: f32[16,128], index: 5, kind: output, shape index: {}]
  %s6 = sld [smem:[#allocation0]]
  $region30: #{pointwise_ffn.1} parent=0
    _
  %s8 = ssub.s32 1, %s6
  %s9 = scalar_select 0, %s8, %s6
  // Predicated region
  $region2: #{pointwise_ffn.1} parent=0 // pred_check
    _
  $region3: #{pointwise_ffn.1} parent=0 // pred_check_branch
    %11 = sbr.rel (0) target = $region5
  $region4: #{pointwise_ffn.1} parent=0 // pred_region
    _
  $region5: #{pointwise_ffn.1} parent=0 // pred_fallthru
    _
  // Predicated region
  $region6: #{pointwise_ffn.1} parent=0 // pred_check
    _
  $region7: #{pointwise_ffn.1} parent=0 // pred_check_branch
    %13 = sbr.rel (0) target = $region9
  $region8: #{pointwise_ffn.1} parent=0 // pred_region
    _
  $region9: #{pointwise_ffn.1} parent=0 // pred_fallthru
    _
  // Predicated region
  $region10: #{pointwise_ffn.1} parent=0 // pred_check
    _
  $region11: #{pointwise_ffn.1} parent=0 // pred_check_branch
    %15 = sbr.rel (0) target = $region13
  $region12: #{pointwise_ffn.1} parent=0 // pred_region
    _
  $region13: #{pointwise_ffn.1} parent=0 // pred_fallthru
    _
  // Predicated region
  $region14: #{pointwise_ffn.1} parent=0 // pred_check
    _
  $region15: #{pointwise_ffn.1} parent=0 // pred_check_branch
    %17 = sbr.rel (0) target = $region17
  $region16: #{pointwise_ffn.1} parent=0 // pred_region
    _
  $region17: #{pointwise_ffn.1} parent=0 // pred_fallthru
    _
  // Predicated region
  $region18: #{pointwise_ffn.1} parent=0 // pred_check
    _
  $region19: #{pointwise_ffn.1} parent=0 // pred_check_branch
    %19 = sbr.rel (0) target = $region21
  $region20: #{pointwise_ffn.1} parent=0 // pred_region
    _
  $region21: #{pointwise_ffn.1} parent=0 // pred_fallthru
    _
  %v20 = vld [vmem:[%s0] sm:$0xff]
  %v21 = vld [vmem:[%s0 + $0x8] sm:$0xff]
  %v22 = vld [vmem:[%s1] sm:$0xff]
  %v23 = vld [vmem:[%s1 + $0x8] sm:$0xff]
  %v24 = vld [vmem:[%s1 + $0x10] sm:$0xff]
  %v25 = vld [vmem:[%s1 + $0x18] sm:$0xff]
  %v26 = vld [vmem:[%s1 + $0x20] sm:$0xff]
  %v27 = vld [vmem:[%s1 + $0x28] sm:$0xff]
  %v28 = vld [vmem:[%s1 + $0x30] sm:$0xff]
  %v29 = vld [vmem:[%s1 + $0x38] sm:$0xff]
  %v30 = vld [vmem:[%s1 + $0x40] sm:$0xff]
  %v31 = vld [vmem:[%s1 + $0x48] sm:$0xff]
  %v32 = vld [vmem:[%s1 + $0x50] sm:$0xff]
  %v33 = vld [vmem:[%s1 + $0x58] sm:$0xff]
  %v34 = vld [vmem:[%s1 + $0x60] sm:$0xff]
  %v35 = vld [vmem:[%s1 + $0x68] sm:$0xff]
  %v36 = vld [vmem:[%s1 + $0x70] sm:$0xff]
  %v37 = vld [vmem:[%s1 + $0x78] sm:$0xff]
  %v38 = vld [vmem:[%s2] sm:$0x1]
  %v40 = vlaneseq
  %v41 = vshrl.u32 %v40, 7
  %v42 = vsub.s32 0, %v41
  %v43 = vrot.slane %v38, %v42
  %45 = vmatprep.subr.mxu0 0.0
  %46 = vmatpush1.msra.mxu0 %v22
  %47 = vmatprep.subr.mxu0 0.0
  %48 = vmatpush1.msra.mxu0 %v23
  %49 = vmatprep.subr.mxu0 0.0
  %50 = vmatpush1.msra.mxu0 %v24
  %51 = vmatprep.subr.mxu0 0.0
  %52 = vmatpush1.msra.mxu0 %v25
  %53 = vmatprep.subr.mxu0 0.0
  %54 = vmatpush1.msra.mxu0 %v26
  %55 = vmatprep.subr.mxu0 0.0
  %56 = vmatpush1.msra.mxu0 %v27
  %57 = vmatprep.subr.mxu0 0.0
  %58 = vmatpush1.msra.mxu0 %v28
  %59 = vmatprep.subr.mxu0 0.0
  %60 = vmatpush1.msra.mxu0 %v29
  %61 = vmatprep.subr.mxu0 0.0
  %62 = vmatpush1.msra.mxu0 %v30
  %63 = vmatprep.subr.mxu0 0.0
  %64 = vmatpush1.msra.mxu0 %v31
  %65 = vmatprep.subr.mxu0 0.0
  %66 = vmatpush1.msra.mxu0 %v32
  %67 = vmatprep.subr.mxu0 0.0
  %68 = vmatpush1.msra.mxu0 %v33
  %69 = vmatprep.subr.mxu0 0.0
  %70 = vmatpush1.msra.mxu0 %v34
  %71 = vmatprep.subr.mxu0 0.0
  %72 = vmatpush1.msra.mxu0 %v35
  %73 = vmatprep.subr.mxu0 0.0
  %74 = vmatpush1.msra.mxu0 %v36
  %75 = vmatprep.subr.mxu0 0.0
  %76 = vmatpush1.msra.mxu0 %v37
  %77 = vmatprep.subr.mxu0 0.0
  %78 = vmatpush1.msra.mxu0 0.0
  %79 = vmatprep.subr.mxu0 0.0
  %80 = vmatpush1.msra.mxu0 0.0
  %81 = vmatprep.subr.mxu0 0.0
  %82 = vmatpush1.msra.mxu0 0.0
  %83 = vmatprep.subr.mxu0 0.0
  %84 = vmatpush1.msra.mxu0 0.0
  %85 = vmatprep.subr.mxu0 0.0
  %86 = vmatpush1.msra.mxu0 0.0
  %87 = vmatprep.subr.mxu0 0.0
  %88 = vmatpush1.msra.mxu0 0.0
  %89 = vmatprep.subr.mxu0 0.0
  %90 = vmatpush1.msra.mxu0 0.0
  %91 = vmatprep.subr.mxu0 0.0
  %92 = vmatpush1.msra.mxu0 0.0
  %93 = vmatprep.subr.mxu0 0.0
  %94 = vmatpush1.msra.mxu0 0.0
  %95 = vmatprep.subr.mxu0 0.0
  %96 = vmatpush1.msra.mxu0 0.0
  %97 = vmatprep.subr.mxu0 0.0
  %98 = vmatpush1.msra.mxu0 0.0
  %99 = vmatprep.subr.mxu0 0.0
  %100 = vmatpush1.msra.mxu0 0.0
  %101 = vmatprep.subr.mxu0 0.0
  %102 = vmatpush1.msra.mxu0 0.0
  %103 = vmatprep.subr.mxu0 0.0
  %104 = vmatpush1.msra.mxu0 0.0
  %105 = vmatprep.subr.mxu0 0.0
  %106 = vmatpush1.msra.mxu0 0.0
  %107 = vmatprep.subr.mxu0 0.0
  %108 = vmatpush1.msra.mxu0 0.0
  %109 = vmatprep.mubr.f32.mxu0 0.0
  %110 = vmatmul.mubr.f32.gmra.mrb[0].mxu0 %v20
  %v111 = vpop.f32.mrb[0].mxu0
  %v112 = vadd.f32 %v43, %v111
  %v113 = vpop.f32.mrb[0].mxu0
  %114 = vmatprep.mubr.f32.mxu0 0.0
  %115 = vmatmul.mubr.f32.gmra.mrb[0].mxu0 %v21
  %v116 = vpop.f32.mrb[0].mxu0
  %v117 = vadd.f32 %v43, %v116
  %v118 = vpop.f32.mrb[0].mxu0
  %119 = vdwg.mxu0
  %v120 = vmax.f32 %v112, 0.0
  %v121 = vmax.f32 %v117, 0.0
  %v122 = vld [vmem:[%s3] sm:$0xff]
  %v123 = vld [vmem:[%s3 + $0x8] sm:$0xff]
  %v124 = vld [vmem:[%s3 + $0x10] sm:$0xff]
  %v125 = vld [vmem:[%s3 + $0x18] sm:$0xff]
  %v126 = vld [vmem:[%s3 + $0x20] sm:$0xff]
  %v127 = vld [vmem:[%s3 + $0x28] sm:$0xff]
  %v128 = vld [vmem:[%s3 + $0x30] sm:$0xff]
  %v129 = vld [vmem:[%s3 + $0x38] sm:$0xff]
  %v130 = vld [vmem:[%s3 + $0x40] sm:$0xff]
  %v131 = vld [vmem:[%s3 + $0x48] sm:$0xff]
  %v132 = vld [vmem:[%s3 + $0x50] sm:$0xff]
  %v133 = vld [vmem:[%s3 + $0x58] sm:$0xff]
  %v134 = vld [vmem:[%s3 + $0x60] sm:$0xff]
  %v135 = vld [vmem:[%s3 + $0x68] sm:$0xff]
  %v136 = vld [vmem:[%s3 + $0x70] sm:$0xff]
  %v137 = vld [vmem:[%s3 + $0x78] sm:$0xff]
  %v138 = vld [vmem:[%s4] sm:$0x1]
  %v140 = vlaneseq
  %v141 = vshrl.u32 %v140, 7
  %v142 = vsub.s32 0, %v141
  %v143 = vrot.slane %v138, %v142
  %145 = vmatprep.subr.mxu0 0.0
  %146 = vmatpush1.msra.mxu0 %v122
  %147 = vmatprep.subr.mxu0 0.0
  %148 = vmatpush1.msra.mxu0 %v123
  %149 = vmatprep.subr.mxu0 0.0
  %150 = vmatpush1.msra.mxu0 %v124
  %151 = vmatprep.subr.mxu0 0.0
  %152 = vmatpush1.msra.mxu0 %v125
  %153 = vmatprep.subr.mxu0 0.0
  %154 = vmatpush1.msra.mxu0 %v126
  %155 = vmatprep.subr.mxu0 0.0
  %156 = vmatpush1.msra.mxu0 %v127
  %157 = vmatprep.subr.mxu0 0.0
  %158 = vmatpush1.msra.mxu0 %v128
  %159 = vmatprep.subr.mxu0 0.0
  %160 = vmatpush1.msra.mxu0 %v129
  %161 = vmatprep.subr.mxu0 0.0
  %162 = vmatpush1.msra.mxu0 %v130
  %163 = vmatprep.subr.mxu0 0.0
  %164 = vmatpush1.msra.mxu0 %v131
  %165 = vmatprep.subr.mxu0 0.0
  %166 = vmatpush1.msra.mxu0 %v132
  %167 = vmatprep.subr.mxu0 0.0
  %168 = vmatpush1.msra.mxu0 %v133
  %169 = vmatprep.subr.mxu0 0.0
  %170 = vmatpush1.msra.mxu0 %v134
  %171 = vmatprep.subr.mxu0 0.0
  %172 = vmatpush1.msra.mxu0 %v135
  %173 = vmatprep.subr.mxu0 0.0
  %174 = vmatpush1.msra.mxu0 %v136
  %175 = vmatprep.subr.mxu0 0.0
  %176 = vmatpush1.msra.mxu0 %v137
  %177 = vmatprep.subr.mxu0 0.0
  %178 = vmatpush1.msra.mxu0 0.0
  %179 = vmatprep.subr.mxu0 0.0
  %180 = vmatpush1.msra.mxu0 0.0
  %181 = vmatprep.subr.mxu0 0.0
  %182 = vmatpush1.msra.mxu0 0.0
  %183 = vmatprep.subr.mxu0 0.0
  %184 = vmatpush1.msra.mxu0 0.0
  %185 = vmatprep.subr.mxu0 0.0
  %186 = vmatpush1.msra.mxu0 0.0
  %187 = vmatprep.subr.mxu0 0.0
  %188 = vmatpush1.msra.mxu0 0.0
  %189 = vmatprep.subr.mxu0 0.0
  %190 = vmatpush1.msra.mxu0 0.0
  %191 = vmatprep.subr.mxu0 0.0
  %192 = vmatpush1.msra.mxu0 0.0
  %193 = vmatprep.subr.mxu0 0.0
  %194 = vmatpush1.msra.mxu0 0.0
  %195 = vmatprep.subr.mxu0 0.0
  %196 = vmatpush1.msra.mxu0 0.0
  %197 = vmatprep.subr.mxu0 0.0
  %198 = vmatpush1.msra.mxu0 0.0
  %199 = vmatprep.subr.mxu0 0.0
  %200 = vmatpush1.msra.mxu0 0.0
  %201 = vmatprep.subr.mxu0 0.0
  %202 = vmatpush1.msra.mxu0 0.0
  %203 = vmatprep.subr.mxu0 0.0
  %204 = vmatpush1.msra.mxu0 0.0
  %205 = vmatprep.subr.mxu0 0.0
  %206 = vmatpush1.msra.mxu0 0.0
  %207 = vmatprep.subr.mxu0 0.0
  %208 = vmatpush1.msra.mxu0 0.0
  %209 = vmatprep.mubr.f32.mxu0 0.0
  %210 = vmatmul.mubr.f32.gmra.mrb[0].mxu0 %v120
  %v211 = vpop.f32.mrb[0].mxu0
  %v212 = vadd.f32 %v143, %v211
  %v213 = vpop.f32.mrb[0].mxu0
  %214 = vmatprep.mubr.f32.mxu0 0.0
  %215 = vmatmul.mubr.f32.gmra.mrb[0].mxu0 %v121
  %v216 = vpop.f32.mrb[0].mxu0
  %v217 = vadd.f32 %v143, %v216
  %v218 = vpop.f32.mrb[0].mxu0
  %219 = vdwg.mxu0
  %220 = vst [vmem:[%s5] sm:$0xff] %v212
  %221 = vst [vmem:[%s5 + $0x8] sm:$0xff] %v217
  // Predicated region
  $region22: #{pointwise_ffn.1} parent=0 // pred_check
    _
  $region23: #{pointwise_ffn.1} parent=0 // pred_check_branch
    %223 = sbr.rel (0) target = $region25
  $region24: #{pointwise_ffn.1} parent=0 // pred_region
    _
  $region25: #{pointwise_ffn.1} parent=0 // pred_fallthru
    _
  // Predicated region
  $region26: #{pointwise_ffn.1} parent=0 // pred_check
    _
  $region27: #{pointwise_ffn.1} parent=0 // pred_check_branch
    %225 = sbr.rel (0) target = $region29
  $region28: #{pointwise_ffn.1} parent=0 // pred_region
    _
  $region29: #{pointwise_ffn.1} parent=0 // pred_fallthru
    _

</llo_original>
